<compile_context>
chip_gen: v5e
topology: v5e:2x2
jax: 0.10.0
libtpu: 0.0.40
codegen_flags: <defaults>
</compile_context>

<pallas_src>
from typing import NamedTuple

import jax
import jax.numpy as jnp
from jax.experimental import pallas as pl
from jax.experimental.pallas import tpu as pltpu

_EPS = 1e-12  # F.normalize default eps


def _round_up(v, m):
    return -(-v // m) * m


def _cdiv(a, b):
    return -(-a // b)


def _cos_matmul_kernel(x_ref, w_ref, sw_ref, o_ref, xsq_ref):
    """K-tiled cosine-similarity matmul.

    x_ref  : [tm, tk] bf16   input tile
    w_ref  : [tk, tn] bf16   weight tile
    sw_ref : [1,  tn] f32    1 / max(||w_col||, eps)
    o_ref  : [tm, tn] f32    output tile; doubles as the f32 accumulator
                             (its index_map ignores k, so it stays resident)
    xsq_ref: [tm, 1]  f32    running sum(x_row^2) scratch
    """
    k = pl.program_id(2)

    @pl.when(k == 0)
    def _():
        o_ref[...] = jnp.zeros_like(o_ref)
        xsq_ref[...] = jnp.zeros_like(xsq_ref)

    x_tile = x_ref[...]
    # MXU: bf16 x bf16 -> f32, accumulate directly into the output tile.
    o_ref[...] += jnp.dot(x_tile, w_ref[...],
                          preferred_element_type=jnp.float32)
    # Fused row-norm: squares on the VPU, cross-lane reduce on the XLU — both
    # sit idle under the MXU-bound steady state.
    xf = x_tile.astype(jnp.float32)
    xsq_ref[...] += jnp.sum(xf * xf, axis=1, keepdims=True)

    @pl.when(k == pl.num_programs(2) - 1)
    def _():
        # rsqrt(max(sum_sq, eps^2)) == 1 / max(||x_row||, eps) (F.normalize).
        inv_xn = jax.lax.rsqrt(jnp.maximum(xsq_ref[...], _EPS * _EPS))
        cos = o_ref[...] * inv_xn * sw_ref[...]
        o_ref[...] = jnp.clip(cos, -1.0, 1.0).astype(o_ref.dtype)


class PreparedWeight(NamedTuple):
    w: jax.Array        # [dp, n] bf16, K zero-padded to a multiple of tk
    inv_wn: jax.Array   # [1, n] f32, 1 / max(||w_col||, eps)
    d: int              # original in_features
    tk: int
    tn: int


def prepare_weight(weight, *, tn_max=512, tk_max=2048):
    """One-time (per layer) weight preprocessing: column norms, bf16 cast,
    reduction-axis zero padding, and N/K tile selection."""
    d, n = weight.shape

    wf = weight.astype(jnp.float32)
    inv_wn = jax.lax.rsqrt(
        jnp.maximum(jnp.sum(wf * wf, axis=0, keepdims=True), _EPS * _EPS))

    # K tile: as large as VMEM allows -> fewer grid steps, less acc RMW traffic.
    tk = min(_round_up(d, 128), tk_max)
    # N tile: >= 256 to fill the 256-wide MXU on v6e/v7x, lane-dense stores.
    tn = min(_round_up(n, 128), tn_max)
    # v7x megacore: if shrinking to 256 buys a second parallel j block while
    # keeping full MXU fill, take it.
    if tn > 256 and _cdiv(n, tn) < 2 <= _cdiv(n, 256):
        tn = 256

    # Only the reduction axis needs true zero padding (garbage there would
    # corrupt both the accumulator and the fused row norm).
    dp = _round_up(d, tk)
    w_bf = weight.astype(jnp.bfloat16)
    if dp != d:
        w_bf = jnp.pad(w_bf, ((0, dp - d), (0, 0)))

    return PreparedWeight(w=w_bf, inv_wn=inv_wn, d=d, tk=tk, tn=tn)


def angle_simple_linear(x, prep: PreparedWeight, *, tm_max=256):
    """cos = normalize(x.reshape(B,-1), dim=1) @ normalize(W, dim=0), clamp [-1,1]."""
    b = x.shape[0]
    x2d = x.reshape(b, -1)
    d = prep.d
    assert x2d.shape[1] == d, (x2d.shape, d)
    dp, n = prep.w.shape
    tk, tn = prep.tk, prep.tn
    tm = min(_round_up(b, 8), tm_max)

    x_bf = x2d.astype(jnp.bfloat16)
    if dp != d:
        x_bf = jnp.pad(x_bf, ((0, 0), (0, dp - d)))   # zero-pad K only

    grid = (_cdiv(b, tm), _cdiv(n, tn), dp // tk)

    # Double-buffered VMEM footprint (+ headroom).  v5e's default scoped limit
    # is only 16 MiB, so make it explicit; keep it well under v7x's 64 MiB.
    est = 2 * 2 * (tm * tk + tk * tn)       # bf16 inputs, 2 buffers each
    est += 2 * 4 * tm * tn                  # f32 output tile
    est += 2 * 4 * tn + 4 * tm              # sw tiles + row-norm scratch
    vmem_limit = int(min(max(2 * est + (8 << 20), 32 << 20), 64 << 20))

    return pl.pallas_call(
        _cos_matmul_kernel,
        out_shape=jax.ShapeDtypeStruct((b, n), jnp.float32),
        grid_spec=pltpu.PrefetchScalarGridSpec(
            num_scalar_prefetch=0,
            grid=grid,
            in_specs=[
                pl.BlockSpec((tm, tk), lambda i, j, k: (i, k)),
                pl.BlockSpec((tk, tn), lambda i, j, k: (k, j)),
                pl.BlockSpec((1, tn), lambda i, j, k: (0, j)),
            ],
            out_specs=pl.BlockSpec((tm, tn), lambda i, j, k: (i, j)),
            scratch_shapes=[pltpu.VMEM((tm, 1), jnp.float32)],
        ),
        compiler_params=pltpu.CompilerParams(
            dimension_semantics=("parallel", "parallel", "arbitrary"),
            vmem_limit_bytes=vmem_limit),
    )(x_bf, prep.w, prep.inv_wn)


def init_weight(key, in_features, out_features):
    """Mirror of: torch.Tensor(in, out).normal_().renorm_(2, 1, 1e-05).mul_(1e5)."""
    w = jax.random.normal(key, (in_features, out_features), dtype=jnp.float32)
    col_norm = jnp.sqrt(jnp.sum(w * w, axis=0, keepdims=True))
    scale = jnp.minimum(1.0, 1e-05 / jnp.maximum(col_norm, 1e-30))
    return w * scale * 100000.0


def reference(x, weight):
    b = x.shape[0]
    x2d = x.reshape(b, -1).astype(jnp.float32)
    xn = x2d / jnp.maximum(
        jnp.sqrt(jnp.sum(x2d * x2d, axis=1, keepdims=True)), _EPS)
    w = weight.astype(jnp.float32)
    wn = w / jnp.maximum(
        jnp.sqrt(jnp.sum(w * w, axis=0, keepdims=True)), _EPS)
    return jnp.clip(xn @ wn, -1.0, 1.0)


if __name__ == "__main__":
    key = jax.random.PRNGKey(0)
    k_x, k_w = jax.random.split(key)

    # PyTorch-style NCHW feature map that forward() flattens per-sample.
    B, C, H, W = 2, 4, 16, 16          # in_features = C*H*W = 1024
    in_features = C * H * W
    out_features = 200                 # non-multiple of 128: exercises ragged N

    x = jax.random.normal(k_x, (B, C, H, W), dtype=jnp.float32)
    weight = init_weight(k_w, in_features, out_features)

    prep = prepare_weight(weight)      # one-time, per-layer
    out = angle_simple_linear(x, prep)
    out = jax.block_until_ready(out)

    ref = reference(x, weight)
    assert out.shape == (B, out_features), out.shape
    max_err = float(jnp.max(jnp.abs(out - ref)))
    # bf16 MXU operands with f32 accumulation: loosened vs the pure-f32 check.
    assert max_err < 2e-2, max_err

    print("KERNEL_OK")
</pallas_src>

<mosaic_0001>
module attributes {stable_mosaic.version = 11 : i64} {
  func.func @_cos_matmul_kernel(%arg0: i32, %arg1: i32, %arg2: i32, %arg3: memref<8x1024xbf16, #tpu.memory_space<vmem>>, %arg4: memref<1024x256xbf16, #tpu.memory_space<vmem>>, %arg5: memref<1x256xf32, #tpu.memory_space<vmem>>, %arg6: memref<8x256xf32, #tpu.memory_space<vmem>>, %arg7: memref<8x1xf32, #tpu.memory_space<vmem>>) attributes {dimension_semantics = [#tpu.dimension_semantics<parallel>, #tpu.dimension_semantics<parallel>, #tpu.dimension_semantics<arbitrary>], iteration_bounds = array<i64: 1, 1, 1>, scalar_prefetch = 0 : i64, scratch_operands = 1 : i64, tpu.core_type = #tpu.core_type<tc>, window_params = [{transform_indices = @transform_0, window_bounds = array<i64: 8, 1024>}, {transform_indices = @transform_1, window_bounds = array<i64: 1024, 256>}, {transform_indices = @transform_2, window_bounds = array<i64: 1, 256>}, {transform_indices = @transform_3, window_bounds = array<i64: 8, 256>}]} {
    %c0_i32 = arith.constant 0 : i32
    %0 = arith.cmpi eq, %arg2, %c0_i32 : i32
    %1 = arith.extui %0 : i1 to i32
    %c0_i32_0 = arith.constant 0 : i32
    %2 = arith.cmpi ne, %1, %c0_i32_0 : i32
    scf.if %2 {
      %cst_15 = arith.constant 0.000000e+00 : f32
      %19 = vector.broadcast %cst_15 : f32 to vector<8x256xf32>
      %c0_16 = arith.constant 0 : index
      %c0_17 = arith.constant 0 : index
      %20 = vector.load %arg6[%c0_16, %c0_17] : memref<8x256xf32, #tpu.memory_space<vmem>>, vector<8x256xf32>
      tpu.vector_store %arg6[%c0_16, %c0_17], %19 {strides = array<i32>} : memref<8x256xf32, #tpu.memory_space<vmem>>, vector<8x256xf32>,
      %cst_18 = arith.constant 0.000000e+00 : f32
      %21 = vector.broadcast %cst_18 : f32 to vector<8x1xf32>
      %c0_19 = arith.constant 0 : index
      %c0_20 = arith.constant 0 : index
      %22 = vector.load %arg7[%c0_19, %c0_20] : memref<8x1xf32, #tpu.memory_space<vmem>>, vector<8x1xf32>
      tpu.vector_store %arg7[%c0_19, %c0_20], %21 {strides = array<i32>} : memref<8x1xf32, #tpu.memory_space<vmem>>, vector<8x1xf32>,
    } else {
    }
    %c0 = arith.constant 0 : index
    %c0_1 = arith.constant 0 : index
    %3 = vector.load %arg3[%c0, %c0_1] : memref<8x1024xbf16, #tpu.memory_space<vmem>>, vector<8x1024xbf16>
    %c0_2 = arith.constant 0 : index
    %c0_3 = arith.constant 0 : index
    %4 = vector.load %arg6[%c0_2, %c0_3] : memref<8x256xf32, #tpu.memory_space<vmem>>, vector<8x256xf32>
    %c0_4 = arith.constant 0 : index
    %c0_5 = arith.constant 0 : index
    %5 = vector.load %arg4[%c0_4, %c0_5] : memref<1024x256xbf16, #tpu.memory_space<vmem>>, vector<1024x256xbf16>
    %cst = arith.constant dense<0.000000e+00> : vector<8x256xf32>
    %6 = tpu.matmul %3, %5, %cst {dimension_numbers = #tpu.dot_dimension_numbers<[1], [0], [0], [1], [0, 0, 1, 1], [], []>} : vector<8x1024xbf16>, vector<1024x256xbf16>, vector<8x256xf32> -> vector<8x256xf32>
    %7 = arith.addf %4, %6 : vector<8x256xf32>
    %c0_6 = arith.constant 0 : index
    %c0_7 = arith.constant 0 : index
    %8 = vector.load %arg6[%c0_6, %c0_7] : memref<8x256xf32, #tpu.memory_space<vmem>>, vector<8x256xf32>
    tpu.vector_store %arg6[%c0_6, %c0_7], %7 {strides = array<i32>} : memref<8x256xf32, #tpu.memory_space<vmem>>, vector<8x256xf32>,
    %9 = arith.extf %3 : vector<8x1024xbf16> to vector<8x1024xf32>
    %c0_8 = arith.constant 0 : index
    %c0_9 = arith.constant 0 : index
    %10 = vector.load %arg7[%c0_8, %c0_9] : memref<8x1xf32, #tpu.memory_space<vmem>>, vector<8x1xf32>
    %11 = arith.mulf %9, %9 : vector<8x1024xf32>
    %cst_10 = arith.constant dense<0.000000e+00> : vector<8xf32>
    %12 = vector.multi_reduction <add>, %11, %cst_10 [1] : vector<8x1024xf32> to vector<8xf32>
    %13 = vector.shape_cast %12 : vector<8xf32> to vector<8x1xf32>
    %14 = arith.addf %10, %13 : vector<8x1xf32>
    %c0_11 = arith.constant 0 : index
    %c0_12 = arith.constant 0 : index
    %15 = vector.load %arg7[%c0_11, %c0_12] : memref<8x1xf32, #tpu.memory_space<vmem>>, vector<8x1xf32>
    tpu.vector_store %arg7[%c0_11, %c0_12], %14 {strides = array<i32>} : memref<8x1xf32, #tpu.memory_space<vmem>>, vector<8x1xf32>,
    %c0_i32_13 = arith.constant 0 : i32
    %16 = arith.cmpi eq, %arg2, %c0_i32_13 : i32
    %17 = arith.extui %16 : i1 to i32
    %c0_i32_14 = arith.constant 0 : i32
    %18 = arith.cmpi ne, %17, %c0_i32_14 : i32
    scf.if %18 {
      %c0_15 = arith.constant 0 : index
      %c0_16 = arith.constant 0 : index
      %19 = vector.load %arg7[%c0_15, %c0_16] : memref<8x1xf32, #tpu.memory_space<vmem>>, vector<8x1xf32>
      %cst_17 = arith.constant 1.000000e-24 : f32
      %20 = vector.broadcast %cst_17 : f32 to vector<8x1xf32>
      %21 = arith.maximumf %19, %20 : vector<8x1xf32>
      %22 = math.rsqrt %21 : vector<8x1xf32>
      %c0_18 = arith.constant 0 : index
      %c0_19 = arith.constant 0 : index
      %23 = vector.load %arg6[%c0_18, %c0_19] : memref<8x256xf32, #tpu.memory_space<vmem>>, vector<8x256xf32>
      %24 = vector.broadcast %22 : vector<8x1xf32> to vector<8x256xf32>
      %25 = arith.mulf %23, %24 : vector<8x256xf32>
      %c0_20 = arith.constant 0 : index
      %c0_21 = arith.constant 0 : index
      %26 = vector.load %arg5[%c0_20, %c0_21] : memref<1x256xf32, #tpu.memory_space<vmem>>, vector<1x256xf32>
      %27 = vector.broadcast %26 : vector<1x256xf32> to vector<8x256xf32>
      %28 = arith.mulf %25, %27 : vector<8x256xf32>
      %cst_22 = arith.constant -1.000000e+00 : f32
      %cst_23 = arith.constant 1.000000e+00 : f32
      %29 = vector.broadcast %cst_22 : f32 to vector<8x256xf32>
      %30 = arith.maximumf %29, %28 : vector<8x256xf32>
      %31 = vector.broadcast %cst_23 : f32 to vector<8x256xf32>
      %32 = arith.minimumf %31, %30 : vector<8x256xf32>
      %c0_24 = arith.constant 0 : index
      %c0_25 = arith.constant 0 : index
      %33 = vector.load %arg6[%c0_24, %c0_25] : memref<8x256xf32, #tpu.memory_space<vmem>>, vector<8x256xf32>
      tpu.vector_store %arg6[%c0_24, %c0_25], %32 {strides = array<i32>} : memref<8x256xf32, #tpu.memory_space<vmem>>, vector<8x256xf32>,
    } else {
    }
    return
  }
  func.func @transform_0(%arg0: i32, %arg1: i32, %arg2: i32) -> (i32, i32) {
    %c0_i32 = arith.constant 0 : i32
    return %arg0, %arg2 : i32, i32
  }
  func.func @transform_1(%arg0: i32, %arg1: i32, %arg2: i32) -> (i32, i32) {
    %c0_i32 = arith.constant 0 : i32
    return %arg2, %arg1 : i32, i32
  }
  func.func @transform_2(%arg0: i32, %arg1: i32, %arg2: i32) -> (i32, i32) {
    %c0_i32 = arith.constant 0 : i32
    %c0_i32_0 = arith.constant 0 : i32
    return %c0_i32, %arg1 : i32, i32
  }
  func.func @transform_3(%arg0: i32, %arg1: i32, %arg2: i32) -> (i32, i32) {
    %c0_i32 = arith.constant 0 : i32
    return %arg0, %arg1 : i32, i32
  }
}

</mosaic_0001>

<llo_original>
// kernel: tpu_custom_call.1
$region0: #{tpu_custom_call.1}
  #allocation0 [shape = 'u32[]', space=smem, size = 0x4, offset = 0x4, fixed_abs, tag = 'smem constant byte address 0x4 - core index']
  #allocation1 [shape = 'u32[72,128]{1,0:T(1,128)}', space=vmem, size = 0x9000, scoped, tag = 'internal scratch']
  #allocation2 [shape = 'f32[8,1]{1,0:T(8,128)}', space=vmem, size = 0x1000, scoped, tag = 'scratch operand']
  %s0 = inlined_call_operand.vmem [shape: bf16[2,1024], index: 0, kind: input, shape index: {}]
  %s1 = inlined_call_operand.vmem [shape: bf16[1024,200], index: 1, kind: input, shape index: {}]
  %s2 = inlined_call_operand.vmem [shape: f32[1,200], index: 2, kind: input, shape index: {}]
  %s3 = inlined_call_operand.hbm [shape: f32[2,200], index: 3, kind: output, shape index: {}]
  %s4 = sld [smem:[#allocation0]]
  $region30: #{tpu_custom_call.1} parent=0
    _
  %s6 = ssub.s32 1, %s4
  %s7 = scalar_select 0, %s6, %s4
  $region1: #{tpu_custom_call.1} parent=0
    #allocation3 [shape = 'u8[8192]{0}', space=vmem, size = 0x2000, scoped, tag = 'output window, operand 0, single buffered']
    #allocation4 [shape = 's32[1]{0}', space=sflag, size = 0x4, scoped, tag = 'scoped memory for tpu_custom_call.1']
    %8 = vsyncpa [#allocation4], 0
    // Predicated region
    $region2: #{tpu_custom_call.1} parent=1 // pred_check
      _
    $region3: #{tpu_custom_call.1} parent=1 // pred_check_branch
      %10 = sbr.rel (0) target = $region5
    $region4: #{tpu_custom_call.1} parent=1 // pred_region
      _
    $region5: #{tpu_custom_call.1} parent=1 // pred_fallthru
      _
    // Predicated region
    $region6: #{tpu_custom_call.1} parent=1 // pred_check
      _
    $region7: #{tpu_custom_call.1} parent=1 // pred_check_branch
      %12 = sbr.rel (0) target = $region9
    $region8: #{tpu_custom_call.1} parent=1 // pred_region
      _
    $region9: #{tpu_custom_call.1} parent=1 // pred_fallthru
      _
    // Predicated region
    $region10: #{tpu_custom_call.1} parent=1 // pred_check
      _
    $region11: #{tpu_custom_call.1} parent=1 // pred_check_branch
      %14 = sbr.rel (0) target = $region13
    $region12: #{tpu_custom_call.1} parent=1 // pred_region
      _
    $region13: #{tpu_custom_call.1} parent=1 // pred_fallthru
      _
    %p15 = scmp.eq.s32.totalorder 0, 0
    // Predicated region
    $region14: #{tpu_custom_call.1} parent=1 // pred_check
      %p16 = pneg %p15
    $region15: #{tpu_custom_call.1} parent=1 // pred_check_branch
      %18 = sbr.rel (%p16) target = $region17
    $region16: #{tpu_custom_call.1} parent=1 // pred_region
      %19 = vst [vmem:[#allocation3] sm:$0xf] 0.0
      %20 = vst [vmem:[#allocation3 + $0x4] sm:$0xf] 0.0
      %21 = vst [vmem:[#allocation3 + $0x8] sm:$0xf] 0.0
      %22 = vst [vmem:[#allocation3 + $0xc] sm:$0xf] 0.0
      %vm23 = vcmask 7168
      %24 = vst.msk [vmem:[#allocation2] sm:$0xff] %vm23, 0.0
    $region17: #{tpu_custom_call.1} parent=1 // pred_fallthru
      _
    %v25 = vld [vmem:[%s0] sm:$0xff]
    %v26 = vld [vmem:[%s0 + $0x8] sm:$0xff]
    %v27 = vld [vmem:[%s0 + $0x10] sm:$0xff]
    %v28 = vld [vmem:[%s0 + $0x18] sm:$0xff]
    %v29 = vld [vmem:[#allocation3] sm:$0xf]
    %v30 = vld [vmem:[#allocation3 + $0x4] sm:$0xf]
    %v31 = vld [vmem:[#allocation3 + $0x8] sm:$0xf]
    %v32 = vld [vmem:[#allocation3 + $0xc] sm:$0xf]
    %v33 = vld [vmem:[%s1] sm:$0xff]
    %v34 = vld [vmem:[%s1 + $0x8] sm:$0xff]
    %v35 = vld [vmem:[%s1 + $0x10] sm:$0xff]
    %v36 = vld [vmem:[%s1 + $0x18] sm:$0xff]
    %v37 = vld [vmem:[%s1 + $0x20] sm:$0xff]
    %v38 = vld [vmem:[%s1 + $0x28] sm:$0xff]
    %v39 = vld [vmem:[%s1 + $0x30] sm:$0xff]
    %v40 = vld [vmem:[%s1 + $0x38] sm:$0xff]
    %v41 = vld [vmem:[%s1 + $0x40] sm:$0xff]
    %v42 = vld [vmem:[%s1 + $0x48] sm:$0xff]
    %v43 = vld [vmem:[%s1 + $0x50] sm:$0xff]
    %v44 = vld [vmem:[%s1 + $0x58] sm:$0xff]
    %v45 = vld [vmem:[%s1 + $0x60] sm:$0xff]
    %v46 = vld [vmem:[%s1 + $0x68] sm:$0xff]
    %v47 = vld [vmem:[%s1 + $0x70] sm:$0xff]
    %v48 = vld [vmem:[%s1 + $0x78] sm:$0xff]
    %v49 = vld [vmem:[%s1 + $0x80] sm:$0xff]
    %v50 = vld [vmem:[%s1 + $0x88] sm:$0xff]
    %v51 = vld [vmem:[%s1 + $0x90] sm:$0xff]
    %v52 = vld [vmem:[%s1 + $0x98] sm:$0xff]
    %v53 = vld [vmem:[%s1 + $0xa0] sm:$0xff]
    %v54 = vld [vmem:[%s1 + $0xa8] sm:$0xff]
    %v55 = vld [vmem:[%s1 + $0xb0] sm:$0xff]
    %v56 = vld [vmem:[%s1 + $0xb8] sm:$0xff]
    %v57 = vld [vmem:[%s1 + $0xc0] sm:$0xff]
    %v58 = vld [vmem:[%s1 + $0xc8] sm:$0xff]
    %v59 = vld [vmem:[%s1 + $0xd0] sm:$0xff]
    %v60 = vld [vmem:[%s1 + $0xd8] sm:$0xff]
    %v61 = vld [vmem:[%s1 + $0xe0] sm:$0xff]
    %v62 = vld [vmem:[%s1 + $0xe8] sm:$0xff]
    %v63 = vld [vmem:[%s1 + $0xf0] sm:$0xff]
    %v64 = vld [vmem:[%s1 + $0xf8] sm:$0xff]
    %v65 = vld [vmem:[%s1 + $0x100] sm:$0xff]
    %v66 = vld [vmem:[%s1 + $0x108] sm:$0xff]
    %v67 = vld [vmem:[%s1 + $0x110] sm:$0xff]
    %v68 = vld [vmem:[%s1 + $0x118] sm:$0xff]
    %v69 = vld [vmem:[%s1 + $0x120] sm:$0xff]
    %v70 = vld [vmem:[%s1 + $0x128] sm:$0xff]
    %v71 = vld [vmem:[%s1 + $0x130] sm:$0xff]
    %v72 = vld [vmem:[%s1 + $0x138] sm:$0xff]
    %v73 = vld [vmem:[%s1 + $0x140] sm:$0xff]
    %v74 = vld [vmem:[%s1 + $0x148] sm:$0xff]
    %v75 = vld [vmem:[%s1 + $0x150] sm:$0xff]
    %v76 = vld [vmem:[%s1 + $0x158] sm:$0xff]
    %v77 = vld [vmem:[%s1 + $0x160] sm:$0xff]
    %v78 = vld [vmem:[%s1 + $0x168] sm:$0xff]
    %v79 = vld [vmem:[%s1 + $0x170] sm:$0xff]
    %v80 = vld [vmem:[%s1 + $0x178] sm:$0xff]
    %v81 = vld [vmem:[%s1 + $0x180] sm:$0xff]
    %v82 = vld [vmem:[%s1 + $0x188] sm:$0xff]
    %v83 = vld [vmem:[%s1 + $0x190] sm:$0xff]
    %v84 = vld [vmem:[%s1 + $0x198] sm:$0xff]
    %v85 = vld [vmem:[%s1 + $0x1a0] sm:$0xff]
    %v86 = vld [vmem:[%s1 + $0x1a8] sm:$0xff]
    %v87 = vld [vmem:[%s1 + $0x1b0] sm:$0xff]
    %v88 = vld [vmem:[%s1 + $0x1b8] sm:$0xff]
    %v89 = vld [vmem:[%s1 + $0x1c0] sm:$0xff]
    %v90 = vld [vmem:[%s1 + $0x1c8] sm:$0xff]
    %v91 = vld [vmem:[%s1 + $0x1d0] sm:$0xff]
    %v92 = vld [vmem:[%s1 + $0x1d8] sm:$0xff]
    %v93 = vld [vmem:[%s1 + $0x1e0] sm:$0xff]
    %v94 = vld [vmem:[%s1 + $0x1e8] sm:$0xff]
    %v95 = vld [vmem:[%s1 + $0x1f0] sm:$0xff]
    %v96 = vld [vmem:[%s1 + $0x1f8] sm:$0xff]
    %v97 = vld [vmem:[%s1 + $0x200] sm:$0xff]
    %v98 = vld [vmem:[%s1 + $0x208] sm:$0xff]
    %v99 = vld [vmem:[%s1 + $0x210] sm:$0xff]
    %v100 = vld [vmem:[%s1 + $0x218] sm:$0xff]
    %v101 = vld [vmem:[%s1 + $0x220] sm:$0xff]
    %v102 = vld [vmem:[%s1 + $0x228] sm:$0xff]
    %v103 = vld [vmem:[%s1 + $0x230] sm:$0xff]
    %v104 = vld [vmem:[%s1 + $0x238] sm:$0xff]
    %v105 = vld [vmem:[%s1 + $0x240] sm:$0xff]
    %v106 = vld [vmem:[%s1 + $0x248] sm:$0xff]
    %v107 = vld [vmem:[%s1 + $0x250] sm:$0xff]
    %v108 = vld [vmem:[%s1 + $0x258] sm:$0xff]
    %v109 = vld [vmem:[%s1 + $0x260] sm:$0xff]
    %v110 = vld [vmem:[%s1 + $0x268] sm:$0xff]
    %v111 = vld [vmem:[%s1 + $0x270] sm:$0xff]
    %v112 = vld [vmem:[%s1 + $0x278] sm:$0xff]
    %v113 = vld [vmem:[%s1 + $0x280] sm:$0xff]
    %v114 = vld [vmem:[%s1 + $0x288] sm:$0xff]
    %v115 = vld [vmem:[%s1 + $0x290] sm:$0xff]
    %v116 = vld [vmem:[%s1 + $0x298] sm:$0xff]
    %v117 = vld [vmem:[%s1 + $0x2a0] sm:$0xff]
    %v118 = vld [vmem:[%s1 + $0x2a8] sm:$0xff]
    %v119 = vld [vmem:[%s1 + $0x2b0] sm:$0xff]
    %v120 = vld [vmem:[%s1 + $0x2b8] sm:$0xff]
    %v121 = vld [vmem:[%s1 + $0x2c0] sm:$0xff]
    %v122 = vld [vmem:[%s1 + $0x2c8] sm:$0xff]
    %v123 = vld [vmem:[%s1 + $0x2d0] sm:$0xff]
    %v124 = vld [vmem:[%s1 + $0x2d8] sm:$0xff]
    %v125 = vld [vmem:[%s1 + $0x2e0] sm:$0xff]
    %v126 = vld [vmem:[%s1 + $0x2e8] sm:$0xff]
    %v127 = vld [vmem:[%s1 + $0x2f0] sm:$0xff]
    %v128 = vld [vmem:[%s1 + $0x2f8] sm:$0xff]
    %v129 = vld [vmem:[%s1 + $0x300] sm:$0xff]
    %v130 = vld [vmem:[%s1 + $0x308] sm:$0xff]
    %v131 = vld [vmem:[%s1 + $0x310] sm:$0xff]
    %v132 = vld [vmem:[%s1 + $0x318] sm:$0xff]
    %v133 = vld [vmem:[%s1 + $0x320] sm:$0xff]
    %v134 = vld [vmem:[%s1 + $0x328] sm:$0xff]
    %v135 = vld [vmem:[%s1 + $0x330] sm:$0xff]
    %v136 = vld [vmem:[%s1 + $0x338] sm:$0xff]
    %v137 = vld [vmem:[%s1 + $0x340] sm:$0xff]
    %v138 = vld [vmem:[%s1 + $0x348] sm:$0xff]
    %v139 = vld [vmem:[%s1 + $0x350] sm:$0xff]
    %v140 = vld [vmem:[%s1 + $0x358] sm:$0xff]
    %v141 = vld [vmem:[%s1 + $0x360] sm:$0xff]
    %v142 = vld [vmem:[%s1 + $0x368] sm:$0xff]
    %v143 = vld [vmem:[%s1 + $0x370] sm:$0xff]
    %v144 = vld [vmem:[%s1 + $0x378] sm:$0xff]
    %v145 = vld [vmem:[%s1 + $0x380] sm:$0xff]
    %v146 = vld [vmem:[%s1 + $0x388] sm:$0xff]
    %v147 = vld [vmem:[%s1 + $0x390] sm:$0xff]
    %v148 = vld [vmem:[%s1 + $0x398] sm:$0xff]
    %v149 = vld [vmem:[%s1 + $0x3a0] sm:$0xff]
    %v150 = vld [vmem:[%s1 + $0x3a8] sm:$0xff]
    %v151 = vld [vmem:[%s1 + $0x3b0] sm:$0xff]
    %v152 = vld [vmem:[%s1 + $0x3b8] sm:$0xff]
    %v153 = vld [vmem:[%s1 + $0x3c0] sm:$0xff]
    %v154 = vld [vmem:[%s1 + $0x3c8] sm:$0xff]
    %v155 = vld [vmem:[%s1 + $0x3d0] sm:$0xff]
    %v156 = vld [vmem:[%s1 + $0x3d8] sm:$0xff]
    %v157 = vld [vmem:[%s1 + $0x3e0] sm:$0xff]
    %v158 = vld [vmem:[%s1 + $0x3e8] sm:$0xff]
    %v159 = vld [vmem:[%s1 + $0x3f0] sm:$0xff]
    %v160 = vld [vmem:[%s1 + $0x3f8] sm:$0xff]
    %162 = vst [vmem:[#allocation1] ss:$9 sm:$0xff] %v25
    %s164 = scalar_lea.vmem [#allocation1], 1
    %165 = vst [vmem:[%s164] ss:$9 sm:$0xff] %v26
    %s167 = scalar_lea.vmem [#allocation1], 2
    %168 = vst [vmem:[%s167] ss:$9 sm:$0xff] %v27
    %s170 = scalar_lea.vmem [#allocation1], 3
    %171 = vst [vmem:[%s170] ss:$9 sm:$0xff] %v28
    %v172 = vld [vmem:[#allocation1] sm:$0xff]
    %v173 = vld [vmem:[#allocation1 + $0x9] sm:$0xff]
    %v174 = vld [vmem:[#allocation1 + $0x12] sm:$0xff]
    %v175 = vld [vmem:[#allocation1 + $0x1b] sm:$0xff]
    %v176 = vld [vmem:[#allocation1 + $0x24] sm:$0xff]
    %v177 = vld [vmem:[#allocation1 + $0x2d] sm:$0xff]
    %v178 = vld [vmem:[#allocation1 + $0x36] sm:$0xff]
    %v179 = vld [vmem:[#allocation1 + $0x3f] sm:$0xff]
    %v316 = vunpack.c.l.b16 %v33
    %v317 = vunpack.c.h.b16 %v33
    %v318 = vunpack.c.l.b16 %v34
    %v319 = vunpack.c.h.b16 %v34
    %v320 = vunpack.c.l.b16 %v35
    %v321 = vunpack.c.h.b16 %v35
    %v322 = vunpack.c.l.b16 %v36
    %v323 = vunpack.c.h.b16 %v36
    %v324 = vunpack.c.l.b16 %v37
    %v325 = vunpack.c.h.b16 %v37
    %v326 = vunpack.c.l.b16 %v38
    %v327 = vunpack.c.h.b16 %v38
    %v328 = vunpack.c.l.b16 %v39
    %v329 = vunpack.c.h.b16 %v39
    %v330 = vunpack.c.l.b16 %v40
    %v331 = vunpack.c.h.b16 %v40
    %v332 = vunpack.c.l.b16 %v41
    %v333 = vunpack.c.h.b16 %v41
    %v334 = vunpack.c.l.b16 %v42
    %v335 = vunpack.c.h.b16 %v42
    %v336 = vunpack.c.l.b16 %v43
    %v337 = vunpack.c.h.b16 %v43
    %v338 = vunpack.c.l.b16 %v44
    %v339 = vunpack.c.h.b16 %v44
    %v340 = vunpack.c.l.b16 %v45
    %v341 = vunpack.c.h.b16 %v45
    %v342 = vunpack.c.l.b16 %v46
    %v343 = vunpack.c.h.b16 %v46
    %v344 = vunpack.c.l.b16 %v47
    %v345 = vunpack.c.h.b16 %v47
    %v346 = vunpack.c.l.b16 %v48
    %v347 = vunpack.c.h.b16 %v48
    %v348 = vunpack.c.l.b16 %v49
    %v349 = vunpack.c.h.b16 %v49
    %v350 = vunpack.c.l.b16 %v50
    %v351 = vunpack.c.h.b16 %v50
    %v352 = vunpack.c.l.b16 %v51
    %v353 = vunpack.c.h.b16 %v51
    %v354 = vunpack.c.l.b16 %v52
    %v355 = vunpack.c.h.b16 %v52
    %v356 = vunpack.c.l.b16 %v53
    %v357 = vunpack.c.h.b16 %v53
    %v358 = vunpack.c.l.b16 %v54
    %v359 = vunpack.c.h.b16 %v54
    %v360 = vunpack.c.l.b16 %v55
    %v361 = vunpack.c.h.b16 %v55
    %v362 = vunpack.c.l.b16 %v56
    %v363 = vunpack.c.h.b16 %v56
    %v364 = vunpack.c.l.b16 %v57
    %v365 = vunpack.c.h.b16 %v57
    %v366 = vunpack.c.l.b16 %v58
    %v367 = vunpack.c.h.b16 %v58
    %v368 = vunpack.c.l.b16 %v59
    %v369 = vunpack.c.h.b16 %v59
    %v370 = vunpack.c.l.b16 %v60
    %v371 = vunpack.c.h.b16 %v60
    %v372 = vunpack.c.l.b16 %v61
    %v373 = vunpack.c.h.b16 %v61
    %v374 = vunpack.c.l.b16 %v62
    %v375 = vunpack.c.h.b16 %v62
    %v376 = vunpack.c.l.b16 %v63
    %v377 = vunpack.c.h.b16 %v63
    %v378 = vunpack.c.l.b16 %v64
    %v379 = vunpack.c.h.b16 %v64
    %v380 = vunpack.c.l.b16 %v65
    %v381 = vunpack.c.h.b16 %v65
    %v382 = vunpack.c.l.b16 %v66
    %v383 = vunpack.c.h.b16 %v66
    %v384 = vunpack.c.l.b16 %v67
    %v385 = vunpack.c.h.b16 %v67
    %v386 = vunpack.c.l.b16 %v68
    %v387 = vunpack.c.h.b16 %v68
    %v388 = vunpack.c.l.b16 %v69
    %v389 = vunpack.c.h.b16 %v69
    %v390 = vunpack.c.l.b16 %v70
    %v391 = vunpack.c.h.b16 %v70
    %v392 = vunpack.c.l.b16 %v71
    %v393 = vunpack.c.h.b16 %v71
    %v394 = vunpack.c.l.b16 %v72
    %v395 = vunpack.c.h.b16 %v72
    %v396 = vunpack.c.l.b16 %v73
    %v397 = vunpack.c.h.b16 %v73
    %v398 = vunpack.c.l.b16 %v74
    %v399 = vunpack.c.h.b16 %v74
    %v400 = vunpack.c.l.b16 %v75
    %v401 = vunpack.c.h.b16 %v75
    %v402 = vunpack.c.l.b16 %v76
    %v403 = vunpack.c.h.b16 %v76
    %v404 = vunpack.c.l.b16 %v77
    %v405 = vunpack.c.h.b16 %v77
    %v406 = vunpack.c.l.b16 %v78
    %v407 = vunpack.c.h.b16 %v78
    %v408 = vunpack.c.l.b16 %v79
    %v409 = vunpack.c.h.b16 %v79
    %v410 = vunpack.c.l.b16 %v80
    %v411 = vunpack.c.h.b16 %v80
    %v412 = vunpack.c.l.b16 %v81
    %v413 = vunpack.c.h.b16 %v81
    %v414 = vunpack.c.l.b16 %v82
    %v415 = vunpack.c.h.b16 %v82
    %v416 = vunpack.c.l.b16 %v83
    %v417 = vunpack.c.h.b16 %v83
    %v418 = vunpack.c.l.b16 %v84
    %v419 = vunpack.c.h.b16 %v84
    %v420 = vunpack.c.l.b16 %v85
    %v421 = vunpack.c.h.b16 %v85
    %v422 = vunpack.c.l.b16 %v86
    %v423 = vunpack.c.h.b16 %v86
    %v424 = vunpack.c.l.b16 %v87
    %v425 = vunpack.c.h.b16 %v87
    %v426 = vunpack.c.l.b16 %v88
    %v427 = vunpack.c.h.b16 %v88
    %v428 = vunpack.c.l.b16 %v89
    %v429 = vunpack.c.h.b16 %v89
    %v430 = vunpack.c.l.b16 %v90
    %v431 = vunpack.c.h.b16 %v90
    %v432 = vunpack.c.l.b16 %v91
    %v433 = vunpack.c.h.b16 %v91
    %v434 = vunpack.c.l.b16 %v92
    %v435 = vunpack.c.h.b16 %v92
    %v436 = vunpack.c.l.b16 %v93
    %v437 = vunpack.c.h.b16 %v93
    %v438 = vunpack.c.l.b16 %v94
    %v439 = vunpack.c.h.b16 %v94
    %v440 = vunpack.c.l.b16 %v95
    %v441 = vunpack.c.h.b16 %v95
    %v442 = vunpack.c.l.b16 %v96
    %v443 = vunpack.c.h.b16 %v96
    %v444 = vunpack.c.l.b16 %v97
    %v445 = vunpack.c.h.b16 %v97
    %v446 = vunpack.c.l.b16 %v98
    %v447 = vunpack.c.h.b16 %v98
    %v448 = vunpack.c.l.b16 %v99
    %v449 = vunpack.c.h.b16 %v99
    %v450 = vunpack.c.l.b16 %v100
    %v451 = vunpack.c.h.b16 %v100
    %v452 = vunpack.c.l.b16 %v101
    %v453 = vunpack.c.h.b16 %v101
    %v454 = vunpack.c.l.b16 %v102
    %v455 = vunpack.c.h.b16 %v102
    %v456 = vunpack.c.l.b16 %v103
    %v457 = vunpack.c.h.b16 %v103
    %v458 = vunpack.c.l.b16 %v104
    %v459 = vunpack.c.h.b16 %v104
    %v460 = vunpack.c.l.b16 %v105
    %v461 = vunpack.c.h.b16 %v105
    %v462 = vunpack.c.l.b16 %v106
    %v463 = vunpack.c.h.b16 %v106
    %v464 = vunpack.c.l.b16 %v107
    %v465 = vunpack.c.h.b16 %v107
    %v466 = vunpack.c.l.b16 %v108
    %v467 = vunpack.c.h.b16 %v108
    %v468 = vunpack.c.l.b16 %v109
    %v469 = vunpack.c.h.b16 %v109
    %v470 = vunpack.c.l.b16 %v110
    %v471 = vunpack.c.h.b16 %v110
    %v472 = vunpack.c.l.b16 %v111
    %v473 = vunpack.c.h.b16 %v111
    %v474 = vunpack.c.l.b16 %v112
    %v475 = vunpack.c.h.b16 %v112
    %v476 = vunpack.c.l.b16 %v113
    %v477 = vunpack.c.h.b16 %v113
    %v478 = vunpack.c.l.b16 %v114
    %v479 = vunpack.c.h.b16 %v114
    %v480 = vunpack.c.l.b16 %v115
    %v481 = vunpack.c.h.b16 %v115
    %v482 = vunpack.c.l.b16 %v116
    %v483 = vunpack.c.h.b16 %v116
    %v484 = vunpack.c.l.b16 %v117
    %v485 = vunpack.c.h.b16 %v117
    %v486 = vunpack.c.l.b16 %v118
    %v487 = vunpack.c.h.b16 %v118
    %v488 = vunpack.c.l.b16 %v119
    %v489 = vunpack.c.h.b16 %v119
    %v490 = vunpack.c.l.b16 %v120
    %v491 = vunpack.c.h.b16 %v120
    %v492 = vunpack.c.l.b16 %v121
    %v493 = vunpack.c.h.b16 %v121
    %v494 = vunpack.c.l.b16 %v122
    %v495 = vunpack.c.h.b16 %v122
    %v496 = vunpack.c.l.b16 %v123
    %v497 = vunpack.c.h.b16 %v123
    %v498 = vunpack.c.l.b16 %v124
    %v499 = vunpack.c.h.b16 %v124
    %v500 = vunpack.c.l.b16 %v125
    %v501 = vunpack.c.h.b16 %v125
    %v502 = vunpack.c.l.b16 %v126
    %v503 = vunpack.c.h.b16 %v126
    %v504 = vunpack.c.l.b16 %v127
    %v505 = vunpack.c.h.b16 %v127
    %v506 = vunpack.c.l.b16 %v128
    %v507 = vunpack.c.h.b16 %v128
    %v508 = vunpack.c.l.b16 %v129
    %v509 = vunpack.c.h.b16 %v129
    %v510 = vunpack.c.l.b16 %v130
    %v511 = vunpack.c.h.b16 %v130
    %v512 = vunpack.c.l.b16 %v131
    %v513 = vunpack.c.h.b16 %v131
    %v514 = vunpack.c.l.b16 %v132
    %v515 = vunpack.c.h.b16 %v132
    %v516 = vunpack.c.l.b16 %v133
    %v517 = vunpack.c.h.b16 %v133
    %v518 = vunpack.c.l.b16 %v134
    %v519 = vunpack.c.h.b16 %v134
    %v520 = vunpack.c.l.b16 %v135
    %v521 = vunpack.c.h.b16 %v135
    %v522 = vunpack.c.l.b16 %v136
    %v523 = vunpack.c.h.b16 %v136
    %v524 = vunpack.c.l.b16 %v137
    %v525 = vunpack.c.h.b16 %v137
    %v526 = vunpack.c.l.b16 %v138
    %v527 = vunpack.c.h.b16 %v138
    %v528 = vunpack.c.l.b16 %v139
    %v529 = vunpack.c.h.b16 %v139
    %v530 = vunpack.c.l.b16 %v140
    %v531 = vunpack.c.h.b16 %v140
    %v532 = vunpack.c.l.b16 %v141
    %v533 = vunpack.c.h.b16 %v141
    %v534 = vunpack.c.l.b16 %v142
    %v535 = vunpack.c.h.b16 %v142
    %v536 = vunpack.c.l.b16 %v143
    %v537 = vunpack.c.h.b16 %v143
    %v538 = vunpack.c.l.b16 %v144
    %v539 = vunpack.c.h.b16 %v144
    %v540 = vunpack.c.l.b16 %v145
    %v541 = vunpack.c.h.b16 %v145
    %v542 = vunpack.c.l.b16 %v146
    %v543 = vunpack.c.h.b16 %v146
    %v544 = vunpack.c.l.b16 %v147
    %v545 = vunpack.c.h.b16 %v147
    %v546 = vunpack.c.l.b16 %v148
    %v547 = vunpack.c.h.b16 %v148
    %v548 = vunpack.c.l.b16 %v149
    %v549 = vunpack.c.h.b16 %v149
    %v550 = vunpack.c.l.b16 %v150
    %v551 = vunpack.c.h.b16 %v150
    %v552 = vunpack.c.l.b16 %v151
    %v553 = vunpack.c.h.b16 %v151
    %v554 = vunpack.c.l.b16 %v152
    %v555 = vunpack.c.h.b16 %v152
    %v556 = vunpack.c.l.b16 %v153
    %v557 = vunpack.c.h.b16 %v153
    %v558 = vunpack.c.l.b16 %v154
    %v559 = vunpack.c.h.b16 %v154
    %v560 = vunpack.c.l.b16 %v155
    %v561 = vunpack.c.h.b16 %v155
    %v562 = vunpack.c.l.b16 %v156
    %v563 = vunpack.c.h.b16 %v156
    %v564 = vunpack.c.l.b16 %v157
    %v565 = vunpack.c.h.b16 %v157
    %v566 = vunpack.c.l.b16 %v158
    %v567 = vunpack.c.h.b16 %v158
    %v568 = vunpack.c.l.b16 %v159
    %v569 = vunpack.c.h.b16 %v159
    %v570 = vunpack.c.l.b16 %v160
    %v571 = vunpack.c.h.b16 %v160
    %v572 = vpack.c.b16 %v318, %v316
    %v573 = vpack.c.b16 %v319, %v317
    %v574 = vpack.c.b16 %v322, %v320
    %v575 = vpack.c.b16 %v323, %v321
    %v576 = vpack.c.b16 %v326, %v324
    %v577 = vpack.c.b16 %v327, %v325
    %v578 = vpack.c.b16 %v330, %v328
    %v579 = vpack.c.b16 %v331, %v329
    %v580 = vpack.c.b16 %v334, %v332
    %v581 = vpack.c.b16 %v335, %v333
    %v582 = vpack.c.b16 %v338, %v336
    %v583 = vpack.c.b16 %v339, %v337
    %v584 = vpack.c.b16 %v342, %v340
    %v585 = vpack.c.b16 %v343, %v341
    %v586 = vpack.c.b16 %v346, %v344
    %v587 = vpack.c.b16 %v347, %v345
    %v588 = vpack.c.b16 %v350, %v348
    %v589 = vpack.c.b16 %v351, %v349
    %v590 = vpack.c.b16 %v354, %v352
    %v591 = vpack.c.b16 %v355, %v353
    %v592 = vpack.c.b16 %v358, %v356
    %v593 = vpack.c.b16 %v359, %v357
    %v594 = vpack.c.b16 %v362, %v360
    %v595 = vpack.c.b16 %v363, %v361
    %v596 = vpack.c.b16 %v366, %v364
    %v597 = vpack.c.b16 %v367, %v365
    %v598 = vpack.c.b16 %v370, %v368
    %v599 = vpack.c.b16 %v371, %v369
    %v600 = vpack.c.b16 %v374, %v372
    %v601 = vpack.c.b16 %v375, %v373
    %v602 = vpack.c.b16 %v378, %v376
    %v603 = vpack.c.b16 %v379, %v377
    %v604 = vpack.c.b16 %v382, %v380
    %v605 = vpack.c.b16 %v383, %v381
    %v606 = vpack.c.b16 %v386, %v384
    %v607 = vpack.c.b16 %v387, %v385
    %v608 = vpack.c.b16 %v390, %v388
    %v609 = vpack.c.b16 %v391, %v389
    %v610 = vpack.c.b16 %v394, %v392
    %v611 = vpack.c.b16 %v395, %v393
    %v612 = vpack.c.b16 %v398, %v396
    %v613 = vpack.c.b16 %v399, %v397
    %v614 = vpack.c.b16 %v402, %v400
    %v615 = vpack.c.b16 %v403, %v401
    %v616 = vpack.c.b16 %v406, %v404
    %v617 = vpack.c.b16 %v407, %v405
    %v618 = vpack.c.b16 %v410, %v408
    %v619 = vpack.c.b16 %v411, %v409
    %v620 = vpack.c.b16 %v414, %v412
    %v621 = vpack.c.b16 %v415, %v413
    %v622 = vpack.c.b16 %v418, %v416
    %v623 = vpack.c.b16 %v419, %v417
    %v624 = vpack.c.b16 %v422, %v420
    %v625 = vpack.c.b16 %v423, %v421
    %v626 = vpack.c.b16 %v426, %v424
    %v627 = vpack.c.b16 %v427, %v425
    %v628 = vpack.c.b16 %v430, %v428
    %v629 = vpack.c.b16 %v431, %v429
    %v630 = vpack.c.b16 %v434, %v432
    %v631 = vpack.c.b16 %v435, %v433
    %v632 = vpack.c.b16 %v438, %v436
    %v633 = vpack.c.b16 %v439, %v437
    %v634 = vpack.c.b16 %v442, %v440
    %v635 = vpack.c.b16 %v443, %v441
    %v636 = vpack.c.b16 %v446, %v444
    %v637 = vpack.c.b16 %v447, %v445
    %v638 = vpack.c.b16 %v450, %v448
    %v639 = vpack.c.b16 %v451, %v449
    %v640 = vpack.c.b16 %v454, %v452
    %v641 = vpack.c.b16 %v455, %v453
    %v642 = vpack.c.b16 %v458, %v456
    %v643 = vpack.c.b16 %v459, %v457
    %v644 = vpack.c.b16 %v462, %v460
    %v645 = vpack.c.b16 %v463, %v461
    %v646 = vpack.c.b16 %v466, %v464
    %v647 = vpack.c.b16 %v467, %v465
    %v648 = vpack.c.b16 %v470, %v468
    %v649 = vpack.c.b16 %v471, %v469
    %v650 = vpack.c.b16 %v474, %v472
    %v651 = vpack.c.b16 %v475, %v473
    %v652 = vpack.c.b16 %v478, %v476
    %v653 = vpack.c.b16 %v479, %v477
    %v654 = vpack.c.b16 %v482, %v480
    %v655 = vpack.c.b16 %v483, %v481
    %v656 = vpack.c.b16 %v486, %v484
    %v657 = vpack.c.b16 %v487, %v485
    %v658 = vpack.c.b16 %v490, %v488
    %v659 = vpack.c.b16 %v491, %v489
    %v660 = vpack.c.b16 %v494, %v492
    %v661 = vpack.c.b16 %v495, %v493
    %v662 = vpack.c.b16 %v498, %v496
    %v663 = vpack.c.b16 %v499, %v497
    %v664 = vpack.c.b16 %v502, %v500
    %v665 = vpack.c.b16 %v503, %v501
    %v666 = vpack.c.b16 %v506, %v504
    %v667 = vpack.c.b16 %v507, %v505
    %v668 = vpack.c.b16 %v510, %v508
    %v669 = vpack.c.b16 %v511, %v509
    %v670 = vpack.c.b16 %v514, %v512
    %v671 = vpack.c.b16 %v515, %v513
    %v672 = vpack.c.b16 %v518, %v516
    %v673 = vpack.c.b16 %v519, %v517
    %v674 = vpack.c.b16 %v522, %v520
    %v675 = vpack.c.b16 %v523, %v521
    %v676 = vpack.c.b16 %v526, %v524
    %v677 = vpack.c.b16 %v527, %v525
    %v678 = vpack.c.b16 %v530, %v528
    %v679 = vpack.c.b16 %v531, %v529
    %v680 = vpack.c.b16 %v534, %v532
    %v681 = vpack.c.b16 %v535, %v533
    %v682 = vpack.c.b16 %v538, %v536
    %v683 = vpack.c.b16 %v539, %v537
    %v684 = vpack.c.b16 %v542, %v540
    %v685 = vpack.c.b16 %v543, %v541
    %v686 = vpack.c.b16 %v546, %v544
    %v687 = vpack.c.b16 %v547, %v545
    %v688 = vpack.c.b16 %v550, %v548
    %v689 = vpack.c.b16 %v551, %v549
    %v690 = vpack.c.b16 %v554, %v552
    %v691 = vpack.c.b16 %v555, %v553
    %v692 = vpack.c.b16 %v558, %v556
    %v693 = vpack.c.b16 %v559, %v557
    %v694 = vpack.c.b16 %v562, %v560
    %v695 = vpack.c.b16 %v563, %v561
    %v696 = vpack.c.b16 %v566, %v564
    %v697 = vpack.c.b16 %v567, %v565
    %v698 = vpack.c.b16 %v570, %v568
    %v699 = vpack.c.b16 %v571, %v569
    %828 = vmatpush.bf16.msra.mxu0 %v586
    %829 = vmatpush.bf16.msra.mxu0 %v584
    %830 = vmatpush.bf16.msra.mxu0 %v582
    %831 = vmatpush.bf16.msra.mxu0 %v580
    %832 = vmatpush.bf16.msra.mxu0 %v578
    %833 = vmatpush.bf16.msra.mxu0 %v576
    %834 = vmatpush.bf16.msra.mxu0 %v574
    %835 = vmatpush.bf16.msra.mxu0 %v572
    %836 = vmatmul.bf16.gmra.mxu0 %v172
    %v837 = vpop.f32.mrf.mxu0
    %v838 = vadd.f32 0.0, %v837
    %v839 = vpop.f32.mrf.mxu0
    %840 = vdwg.mxu0
    %841 = vmatpush.bf16.msra.mxu0 %v602
    %842 = vmatpush.bf16.msra.mxu0 %v600
    %843 = vmatpush.bf16.msra.mxu0 %v598
    %844 = vmatpush.bf16.msra.mxu0 %v596
    %845 = vmatpush.bf16.msra.mxu0 %v594
    %846 = vmatpush.bf16.msra.mxu0 %v592
    %847 = vmatpush.bf16.msra.mxu0 %v590
    %848 = vmatpush.bf16.msra.mxu0 %v588
    %849 = vmatmul.bf16.gmra.mxu0 %v173
    %v850 = vpop.f32.mrf.mxu0
    %v851 = vadd.f32 %v838, %v850
    %v852 = vpop.f32.mrf.mxu0
    %853 = vdwg.mxu0
    %854 = vmatpush.bf16.msra.mxu0 %v618
    %855 = vmatpush.bf16.msra.mxu0 %v616
    %856 = vmatpush.bf16.msra.mxu0 %v614
    %857 = vmatpush.bf16.msra.mxu0 %v612
    %858 = vmatpush.bf16.msra.mxu0 %v610
    %859 = vmatpush.bf16.msra.mxu0 %v608
    %860 = vmatpush.bf16.msra.mxu0 %v606
    %861 = vmatpush.bf16.msra.mxu0 %v604
    %862 = vmatmul.bf16.gmra.mxu0 %v174
    %v863 = vpop.f32.mrf.mxu0
    %v864 = vadd.f32 %v851, %v863
    %v865 = vpop.f32.mrf.mxu0
    %866 = vdwg.mxu0
    %867 = vmatpush.bf16.msra.mxu0 %v634
    %868 = vmatpush.bf16.msra.mxu0 %v632
    %869 = vmatpush.bf16.msra.mxu0 %v630
    %870 = vmatpush.bf16.msra.mxu0 %v628
    %871 = vmatpush.bf16.msra.mxu0 %v626
    %872 = vmatpush.bf16.msra.mxu0 %v624
    %873 = vmatpush.bf16.msra.mxu0 %v622
    %874 = vmatpush.bf16.msra.mxu0 %v620
    %875 = vmatmul.bf16.gmra.mxu0 %v175
    %v876 = vpop.f32.mrf.mxu0
    %v877 = vadd.f32 %v864, %v876
    %v878 = vpop.f32.mrf.mxu0
    %879 = vdwg.mxu0
    %880 = vmatpush.bf16.msra.mxu0 %v650
    %881 = vmatpush.bf16.msra.mxu0 %v648
    %882 = vmatpush.bf16.msra.mxu0 %v646
    %883 = vmatpush.bf16.msra.mxu0 %v644
    %884 = vmatpush.bf16.msra.mxu0 %v642
    %885 = vmatpush.bf16.msra.mxu0 %v640
    %886 = vmatpush.bf16.msra.mxu0 %v638
    %887 = vmatpush.bf16.msra.mxu0 %v636
    %888 = vmatmul.bf16.gmra.mxu0 %v176
    %v889 = vpop.f32.mrf.mxu0
    %v890 = vadd.f32 %v877, %v889
    %v891 = vpop.f32.mrf.mxu0
    %892 = vdwg.mxu0
    %893 = vmatpush.bf16.msra.mxu0 %v666
    %894 = vmatpush.bf16.msra.mxu0 %v664
    %895 = vmatpush.bf16.msra.mxu0 %v662
    %896 = vmatpush.bf16.msra.mxu0 %v660
    %897 = vmatpush.bf16.msra.mxu0 %v658
    %898 = vmatpush.bf16.msra.mxu0 %v656
    %899 = vmatpush.bf16.msra.mxu0 %v654
    %900 = vmatpush.bf16.msra.mxu0 %v652
    %901 = vmatmul.bf16.gmra.mxu0 %v177
    %v902 = vpop.f32.mrf.mxu0
    %v903 = vadd.f32 %v890, %v902
    %v904 = vpop.f32.mrf.mxu0
    %905 = vdwg.mxu0
    %906 = vmatpush.bf16.msra.mxu0 %v682
    %907 = vmatpush.bf16.msra.mxu0 %v680
    %908 = vmatpush.bf16.msra.mxu0 %v678
    %909 = vmatpush.bf16.msra.mxu0 %v676
    %910 = vmatpush.bf16.msra.mxu0 %v674
    %911 = vmatpush.bf16.msra.mxu0 %v672
    %912 = vmatpush.bf16.msra.mxu0 %v670
    %913 = vmatpush.bf16.msra.mxu0 %v668
    %914 = vmatmul.bf16.gmra.mxu0 %v178
    %v915 = vpop.f32.mrf.mxu0
    %v916 = vadd.f32 %v903, %v915
    %v917 = vpop.f32.mrf.mxu0
    %918 = vdwg.mxu0
    %919 = vmatpush.bf16.msra.mxu0 %v698
    %920 = vmatpush.bf16.msra.mxu0 %v696
    %921 = vmatpush.bf16.msra.mxu0 %v694
    %922 = vmatpush.bf16.msra.mxu0 %v692
    %923 = vmatpush.bf16.msra.mxu0 %v690
    %924 = vmatpush.bf16.msra.mxu0 %v688
    %925 = vmatpush.bf16.msra.mxu0 %v686
    %926 = vmatpush.bf16.msra.mxu0 %v684
    %927 = vmatmul.bf16.gmra.mxu0 %v179
    %v928 = vpop.f32.mrf.mxu0
    %v929 = vadd.f32 %v916, %v928
    %v930 = vpop.f32.mrf.mxu0
    %931 = vdwg.mxu0
    %932 = vmatpush.bf16.msra.mxu0 %v587
    %933 = vmatpush.bf16.msra.mxu0 %v585
    %934 = vmatpush.bf16.msra.mxu0 %v583
    %935 = vmatpush.bf16.msra.mxu0 %v581
    %936 = vmatpush.bf16.msra.mxu0 %v579
    %937 = vmatpush.bf16.msra.mxu0 %v577
    %938 = vmatpush.bf16.msra.mxu0 %v575
    %939 = vmatpush.bf16.msra.mxu0 %v573
    %940 = vmatmul.bf16.gmra.mxu0 %v172
    %v941 = vpop.f32.mrf.mxu0
    %v942 = vadd.f32 0.0, %v941
    %v943 = vpop.f32.mrf.mxu0
    %944 = vdwg.mxu0
    %945 = vmatpush.bf16.msra.mxu0 %v603
    %946 = vmatpush.bf16.msra.mxu0 %v601
    %947 = vmatpush.bf16.msra.mxu0 %v599
    %948 = vmatpush.bf16.msra.mxu0 %v597
    %949 = vmatpush.bf16.msra.mxu0 %v595
    %950 = vmatpush.bf16.msra.mxu0 %v593
    %951 = vmatpush.bf16.msra.mxu0 %v591
    %952 = vmatpush.bf16.msra.mxu0 %v589
    %953 = vmatmul.bf16.gmra.mxu0 %v173
    %v954 = vpop.f32.mrf.mxu0
    %v955 = vadd.f32 %v942, %v954
    %v956 = vpop.f32.mrf.mxu0
    %957 = vdwg.mxu0
    %958 = vmatpush.bf16.msra.mxu0 %v619
    %959 = vmatpush.bf16.msra.mxu0 %v617
    %960 = vmatpush.bf16.msra.mxu0 %v615
    %961 = vmatpush.bf16.msra.mxu0 %v613
    %962 = vmatpush.bf16.msra.mxu0 %v611
    %963 = vmatpush.bf16.msra.mxu0 %v609
    %964 = vmatpush.bf16.msra.mxu0 %v607
    %965 = vmatpush.bf16.msra.mxu0 %v605
    %966 = vmatmul.bf16.gmra.mxu0 %v174
    %v967 = vpop.f32.mrf.mxu0
    %v968 = vadd.f32 %v955, %v967
    %v969 = vpop.f32.mrf.mxu0
    %970 = vdwg.mxu0
    %971 = vmatpush.bf16.msra.mxu0 %v635
    %972 = vmatpush.bf16.msra.mxu0 %v633
    %973 = vmatpush.bf16.msra.mxu0 %v631
    %974 = vmatpush.bf16.msra.mxu0 %v629
    %975 = vmatpush.bf16.msra.mxu0 %v627
    %976 = vmatpush.bf16.msra.mxu0 %v625
    %977 = vmatpush.bf16.msra.mxu0 %v623
    %978 = vmatpush.bf16.msra.mxu0 %v621
    %979 = vmatmul.bf16.gmra.mxu0 %v175
    %v980 = vpop.f32.mrf.mxu0
    %v981 = vadd.f32 %v968, %v980
    %v982 = vpop.f32.mrf.mxu0
    %983 = vdwg.mxu0
    %984 = vmatpush.bf16.msra.mxu0 %v651
    %985 = vmatpush.bf16.msra.mxu0 %v649
    %986 = vmatpush.bf16.msra.mxu0 %v647
    %987 = vmatpush.bf16.msra.mxu0 %v645
    %988 = vmatpush.bf16.msra.mxu0 %v643
    %989 = vmatpush.bf16.msra.mxu0 %v641
    %990 = vmatpush.bf16.msra.mxu0 %v639
    %991 = vmatpush.bf16.msra.mxu0 %v637
    %992 = vmatmul.bf16.gmra.mxu0 %v176
    %v993 = vpop.f32.mrf.mxu0
    %v994 = vadd.f32 %v981, %v993
    %v995 = vpop.f32.mrf.mxu0
    %996 = vdwg.mxu0
    %997 = vmatpush.bf16.msra.mxu0 %v667
    %998 = vmatpush.bf16.msra.mxu0 %v665
    %999 = vmatpush.bf16.msra.mxu0 %v663
    %1000 = vmatpush.bf16.msra.mxu0 %v661
    %1001 = vmatpush.bf16.msra.mxu0 %v659
    %1002 = vmatpush.bf16.msra.mxu0 %v657
    %1003 = vmatpush.bf16.msra.mxu0 %v655
    %1004 = vmatpush.bf16.msra.mxu0 %v653
    %1005 = vmatmul.bf16.gmra.mxu0 %v177
    %v1006 = vpop.f32.mrf.mxu0
    %v1007 = vadd.f32 %v994, %v1006
    %v1008 = vpop.f32.mrf.mxu0
    %1009 = vdwg.mxu0
    %1010 = vmatpush.bf16.msra.mxu0 %v683
    %1011 = vmatpush.bf16.msra.mxu0 %v681
    %1012 = vmatpush.bf16.msra.mxu0 %v679
    %1013 = vmatpush.bf16.msra.mxu0 %v677
    %1014 = vmatpush.bf16.msra.mxu0 %v675
    %1015 = vmatpush.bf16.msra.mxu0 %v673
    %1016 = vmatpush.bf16.msra.mxu0 %v671
    %1017 = vmatpush.bf16.msra.mxu0 %v669
    %1018 = vmatmul.bf16.gmra.mxu0 %v178
    %v1019 = vpop.f32.mrf.mxu0
    %v1020 = vadd.f32 %v1007, %v1019
    %v1021 = vpop.f32.mrf.mxu0
    %1022 = vdwg.mxu0
    %1023 = vmatpush.bf16.msra.mxu0 %v699
    %1024 = vmatpush.bf16.msra.mxu0 %v697
    %1025 = vmatpush.bf16.msra.mxu0 %v695
    %1026 = vmatpush.bf16.msra.mxu0 %v693
    %1027 = vmatpush.bf16.msra.mxu0 %v691
    %1028 = vmatpush.bf16.msra.mxu0 %v689
    %1029 = vmatpush.bf16.msra.mxu0 %v687
    %1030 = vmatpush.bf16.msra.mxu0 %v685
    %1031 = vmatmul.bf16.gmra.mxu0 %v179
    %v1032 = vpop.f32.mrf.mxu0
    %v1033 = vadd.f32 %v1020, %v1032
    %v1034 = vpop.f32.mrf.mxu0
    %1035 = vdwg.mxu0
    %v1038 = vrot.slane %v1033, 6
    %vm1039 = vcmask 1041408
    %v1040 = vsel %vm1039, %v929, %v1038
    %vm1041 = vcmask 1043458
    %v1042 = vsel %vm1041, %v929, %v1038
    %v1043 = vrot.slane %v1042, 2
    %vm1044 = vcmask 1045508
    %v1045 = vsel %vm1044, %v929, %v1038
    %v1046 = vrot.slane %v1045, 4
    %vm1047 = vcmask 1045504
    %v1048 = vsel %vm1047, %v1038, %v929
    %v1049 = vrot.slane %v1048, 6
    %v1054 = vadd.f32 %v29, %v1040
    %v1055 = vadd.f32 %v30, %v1043
    %v1056 = vadd.f32 %v31, %v1046
    %v1057 = vadd.f32 %v32, %v1049
    %1058 = vst [vmem:[#allocation3] sm:$0xf] %v1054
    %1059 = vst [vmem:[#allocation3 + $0x4] sm:$0xf] %v1055
    %1060 = vst [vmem:[#allocation3 + $0x8] sm:$0xf] %v1056
    %1061 = vst [vmem:[#allocation3 + $0xc] sm:$0xf] %v1057
    %v1062 = vunpack.c.l.bf16 %v25
    %v1063 = vunpack.c.h.bf16 %v25
    %v1064 = vunpack.c.l.bf16 %v26
    %v1065 = vunpack.c.h.bf16 %v26
    %v1066 = vunpack.c.l.bf16 %v27
    %v1067 = vunpack.c.h.bf16 %v27
    %v1068 = vunpack.c.l.bf16 %v28
    %v1069 = vunpack.c.h.bf16 %v28
    %v1070 = vld [vmem:[#allocation2] sm:$0xff]
    %v1071 = vmul.f32 %v1062, %v1062
    %v1072 = vmul.f32 %v1063, %v1063
    %v1073 = vmul.f32 %v1064, %v1064
    %v1074 = vmul.f32 %v1065, %v1065
    %v1075 = vmul.f32 %v1066, %v1066
    %v1076 = vmul.f32 %v1067, %v1067
    %v1077 = vmul.f32 %v1068, %v1068
    %v1078 = vmul.f32 %v1069, %v1069
    %1087 = vst [vmem:[#allocation1] ss:$4 sm:$0xff] %v1071
    %s1088 = scalar_lea.vmem [#allocation1], 1
    %1089 = vst [vmem:[%s1088] ss:$4 sm:$0xff] %v1073
    %s1090 = scalar_lea.vmem [#allocation1], 2
    %1091 = vst [vmem:[%s1090] ss:$4 sm:$0xff] %v1075
    %s1092 = scalar_lea.vmem [#allocation1], 3
    %1093 = vst [vmem:[%s1092] ss:$4 sm:$0xff] %v1077
    %s1094 = scalar_lea.vmem [#allocation1], 32
    %1095 = vst [vmem:[%s1094] ss:$4 sm:$0xff] %v1072
    %s1096 = scalar_lea.vmem [#allocation1], 33
    %1097 = vst [vmem:[%s1096] ss:$4 sm:$0xff] %v1074
    %s1098 = scalar_lea.vmem [#allocation1], 34
    %1099 = vst [vmem:[%s1098] ss:$4 sm:$0xff] %v1076
    %s1100 = scalar_lea.vmem [#allocation1], 35
    %1101 = vst [vmem:[%s1100] ss:$4 sm:$0xff] %v1078
    %v1102 = vld.sshfl [vmem:[#allocation1] sm:$0xff pattern:$0x73625140]
    %v1103 = vld.sshfl [vmem:[#allocation1 + $0x8] sm:$0xff pattern:$0x73625140]
    %v1104 = vld.sshfl [vmem:[#allocation1 + $0x10] sm:$0xff pattern:$0x73625140]
    %v1105 = vld.sshfl [vmem:[#allocation1 + $0x18] sm:$0xff pattern:$0x73625140]
    %v1106 = vld.sshfl [vmem:[#allocation1 + $0x20] sm:$0xff pattern:$0x73625140]
    %v1107 = vld.sshfl [vmem:[#allocation1 + $0x28] sm:$0xff pattern:$0x73625140]
    %v1108 = vld.sshfl [vmem:[#allocation1 + $0x30] sm:$0xff pattern:$0x73625140]
    %v1109 = vld.sshfl [vmem:[#allocation1 + $0x38] sm:$0xff pattern:$0x73625140]
    %v1118 = vadd.f32 %v1102, %v1103
    %v1119 = vadd.f32 %v1118, %v1104
    %v1120 = vadd.f32 %v1119, %v1105
    %v1121 = vadd.f32 %v1120, %v1106
    %v1122 = vadd.f32 %v1121, %v1107
    %v1123 = vadd.f32 %v1122, %v1108
    %v1124 = vadd.f32 %v1123, %v1109
    %1125 = vadd.xlane.f32.xlu0 %v1124
    %v1126 = vpop.xlane.xlu0 %1125
    %v1127 = vadd.f32 %v1070, %v1126
    %vm1128 = vcmask 7168
    %1129 = vst.msk [vmem:[#allocation2] sm:$0xff] %vm1128, %v1127
    // Predicated region
    $region18: #{tpu_custom_call.1} parent=1 // pred_check
      %p1130 = pneg %p15
    $region19: #{tpu_custom_call.1} parent=1 // pred_check_branch
      %1132 = sbr.rel (%p1130) target = $region21
    $region20: #{tpu_custom_call.1} parent=1 // pred_region
      %v1133 = vld [vmem:[#allocation2] sm:$0xff]
      %v1134 = vmax.f32 %v1133, 1e-24
      %v1135 = vrsqrt.pop %v1134
      %v1136 = vmul.f32 %v1135, %v1134
      %v1137 = vmul.f32 %v1136, %v1135
      %v1138 = vmul.f32 0.5, %v1137
      %v1139 = vsub.f32 1.5, %v1138
      %v1140 = vmul.f32 %v1135, %v1139
      %vm1141 = vweird.f32 %v1134
      %vm1142 = vweird.f32 %v1135
      %vm1143 = vmor %vm1141, %vm1142
      %v1144 = vsel %vm1143, %v1135, %v1140
      %v1145 = vld [vmem:[#allocation3] sm:$0xf]
      %v1146 = vld [vmem:[#allocation3 + $0x4] sm:$0xf]
      %v1147 = vld [vmem:[#allocation3 + $0x8] sm:$0xf]
      %v1148 = vld [vmem:[#allocation3 + $0xc] sm:$0xf]
      %1150 = vset.pattern.permute.xlu0 0
      %1151 = vperm.xlu0 %1150, %v1144
      %v1152 = vpop.permute.xlu0 %1151
      %v1154 = vunpack.c.l.s4 269488144
      %v1155 = vunpack.c.0.s8 %v1154
      %v1156 = vperm.slane %v1152, %v1155
      %v1158 = vunpack.c.l.s4 842150450
      %v1159 = vunpack.c.0.s8 %v1158
      %v1160 = vperm.slane %v1152, %v1159
      %v1162 = vunpack.c.l.s4 1414812756
      %v1163 = vunpack.c.0.s8 %v1162
      %v1164 = vperm.slane %v1152, %v1163
      %v1166 = vunpack.c.l.s4 1987475062
      %v1167 = vunpack.c.0.s8 %v1166
      %v1168 = vperm.slane %v1152, %v1167
      %v1173 = vmul.f32 %v1145, %v1156
      %v1174 = vmul.f32 %v1146, %v1160
      %v1175 = vmul.f32 %v1147, %v1164
      %v1176 = vmul.f32 %v1148, %v1168
      %v1177 = vld [vmem:[%s2] sm:$0x3]
      %v1179 = vperm.slane %v1177, 0
      %v1180 = vperm.slane %v1177, 1
      %v1181 = vrot.slane %v1180, 6
      %v1182 = vsel %vm1039, %v1179, %v1181
      %v1183 = vsel %vm1041, %v1179, %v1181
      %v1184 = vrot.slane %v1183, 2
      %v1185 = vsel %vm1044, %v1179, %v1181
      %v1186 = vrot.slane %v1185, 4
      %v1187 = vsel %vm1047, %v1181, %v1179
      %v1188 = vrot.slane %v1187, 6
      %v1193 = vmul.f32 %v1173, %v1182
      %v1194 = vmul.f32 %v1174, %v1184
      %v1195 = vmul.f32 %v1175, %v1186
      %v1196 = vmul.f32 %v1176, %v1188
      %v1197 = vmax.f32 %v1193, -1.0
      %v1198 = vmax.f32 %v1194, -1.0
      %v1199 = vmax.f32 %v1195, -1.0
      %v1200 = vmax.f32 %v1196, -1.0
      %v1201 = vmin.f32 %v1197, 1.0
      %v1202 = vmin.f32 %v1198, 1.0
      %v1203 = vmin.f32 %v1199, 1.0
      %v1204 = vmin.f32 %v1200, 1.0
      %1205 = vst [vmem:[#allocation3] sm:$0xf] %v1201
      %1206 = vst [vmem:[#allocation3 + $0x4] sm:$0xf] %v1202
      %1207 = vst [vmem:[#allocation3 + $0x8] sm:$0xf] %v1203
      %1208 = vst [vmem:[#allocation3 + $0xc] sm:$0xf] %v1204
    $region21: #{tpu_custom_call.1} parent=1 // pred_fallthru
      _
    // Predicated region
    $region22: #{tpu_custom_call.1} parent=1 // pred_check
      _
    $region23: #{tpu_custom_call.1} parent=1 // pred_check_branch
      %1210 = sbr.rel (0) target = $region25
    $region24: #{tpu_custom_call.1} parent=1 // pred_region
      %1212 = vsyncadd [#allocation4], 192
      %s1213 = sshll.u32 [#allocation3], 4
      %s1214 = int_to_ptr.vmem [resolvable:$true] %s1213
      %s1215 = sshll.u32 %s3, 4
      %s1216 = int_to_ptr.hbm [resolvable:$true] %s1215
      %1221 = dma.vmem_to_hbm [thread:$0]  %s1214, 64, %s1216, [#allocation4], 64, 64, 4
    $region25: #{tpu_custom_call.1} parent=1 // pred_fallthru
      _
    // Predicated region
    $region26: #{tpu_custom_call.1} parent=1 // pred_check
      _
    $region27: #{tpu_custom_call.1} parent=1 // pred_check_branch
      %1223 = sbr.rel (0) target = $region29
    $region28: #{tpu_custom_call.1} parent=1 // pred_region
      %1225 = dma.done [#allocation4], 256
    $region29: #{tpu_custom_call.1} parent=1 // pred_fallthru
      _
    %1226 = vsyncpa [#allocation4], 1

</llo_original>
